<compile_context>
chip_gen: v7x
topology: tpu7x:2x2x1
jax: 0.10.0
libtpu: 0.0.40
codegen_flags: <defaults>
</compile_context>

<pallas_src>
import functools

import numpy as np
import jax
import jax.numpy as jnp
from jax.experimental import pallas as pl
from jax.experimental.pallas import tpu as pltpu

N_QUBITS = 4
DEPTH = 3
HID1 = 128
HID2 = 256
OUTPUT_DIM = 16 * 16
BN_EPS = 1e-5
N_STATES = 2 ** N_QUBITS


# ----------------------------------------------------------------------------
# Static circuit tables (wire 0 = most-significant bit of the basis index)
# ----------------------------------------------------------------------------
def _cnot_ring_source_indices():
    """Composite CNOT(0,1);CNOT(1,2);CNOT(2,3);CNOT(3,0) as new[k]=old[src[k]]."""
    def cnot_mat(c, t):
        P = np.zeros((N_STATES, N_STATES), dtype=np.float32)
        for j in range(N_STATES):
            bits = [(j >> (N_QUBITS - 1 - w)) & 1 for w in range(N_QUBITS)]
            bits[t] ^= bits[c]
            k = 0
            for w, b in enumerate(bits):
                k |= b << (N_QUBITS - 1 - w)
            P[k, j] = 1.0
        return P

    C = np.eye(N_STATES, dtype=np.float32)
    for i in range(N_QUBITS):
        C = cnot_mat(i, (i + 1) % N_QUBITS) @ C
    return C.argmax(axis=1).astype(np.int32)


_CNOT_SRC = _cnot_ring_source_indices()
# RZ sign per (basis state, wire): bit 0 -> exp(-i phi/2) (sign -1), bit 1 -> +1
_RZ_SIGNS = np.array(
    [[1.0 if ((k >> (N_QUBITS - 1 - w)) & 1) else -1.0 for w in range(N_QUBITS)]
     for k in range(N_STATES)], dtype=np.float32)
# PauliZ eigenvalue per (basis state, wire): bit 0 -> +1, bit 1 -> -1
_Z_SIGNS = -_RZ_SIGNS


def quantum_expvals_batched(qparams, x):
    """qparams: (DEPTH*2*N_QUBITS,), x: (B, N_QUBITS) -> (B, N_QUBITS) <Z_i>."""
    B = x.shape[0]
    sr = jnp.zeros((B, N_STATES), jnp.float32).at[:, 0].set(1.0)
    si = jnp.zeros((B, N_STATES), jnp.float32)
    rz_signs = jnp.asarray(_RZ_SIGNS)
    z_signs = jnp.asarray(_Z_SIGNS)

    for d in range(DEPTH):
        # RY(data) then RY(param) on the same wire == RY(data + param).
        theta = x + qparams[d * 2 * N_QUBITS: d * 2 * N_QUBITS + N_QUBITS][None, :]
        c = jnp.cos(0.5 * theta)                       # (B, 4)
        s = jnp.sin(0.5 * theta)
        sr4 = sr.reshape((B,) + (2,) * N_QUBITS)
        si4 = si.reshape((B,) + (2,) * N_QUBITS)
        for w in range(N_QUBITS):
            ax = 1 + w
            cw = c[:, w].reshape((B,) + (1,) * N_QUBITS)
            sw = s[:, w].reshape((B,) + (1,) * N_QUBITS)
            r0 = jax.lax.slice_in_dim(sr4, 0, 1, axis=ax)
            r1 = jax.lax.slice_in_dim(sr4, 1, 2, axis=ax)
            i0 = jax.lax.slice_in_dim(si4, 0, 1, axis=ax)
            i1 = jax.lax.slice_in_dim(si4, 1, 2, axis=ax)
            sr4 = jnp.concatenate([cw * r0 - sw * r1, sw * r0 + cw * r1], axis=ax)
            si4 = jnp.concatenate([cw * i0 - sw * i1, sw * i0 + cw * i1], axis=ax)
        sr = sr4.reshape(B, N_STATES)
        si = si4.reshape(B, N_STATES)

        # CNOT ring: static basis permutation.
        sr = jnp.take(sr, jnp.asarray(_CNOT_SRC), axis=1)
        si = jnp.take(si, jnp.asarray(_CNOT_SRC), axis=1)

        # RZ layer: diagonal phase.
        phi = qparams[d * 2 * N_QUBITS + N_QUBITS: (d + 1) * 2 * N_QUBITS]   # (4,)
        ang = 0.5 * (rz_signs @ phi)                                         # (16,)
        pr = jnp.cos(ang)[None, :]
        pi = jnp.sin(ang)[None, :]
        sr, si = sr * pr - si * pi, sr * pi + si * pr

    probs = sr * sr + si * si                          # (B, 16)
    return probs @ z_signs                             # (B, 4)


# ----------------------------------------------------------------------------
# Pallas kernels for the MLP head
# ----------------------------------------------------------------------------
def _fc1_fma(q, w1):
    """(B,4) x (4,128) contraction as 4 broadcast FMAs (keeps K=4 off the MXU)."""
    h = q[:, 0:1] * w1[0:1, :]
    for i in range(1, N_QUBITS):
        h = h + q[:, i:i + 1] * w1[i:i + 1, :]
    return h


def _fc1_stats_kernel(q_ref, w1_ref, stats_ref):
    # Zero-padded batch rows give h1 == 0, so they do not perturb the sums.
    h1 = _fc1_fma(q_ref[...], w1_ref[...])
    s = jnp.sum(h1, axis=0, keepdims=True)
    s2 = jnp.sum(h1 * h1, axis=0, keepdims=True)
    stats_ref[0] = jnp.concatenate([s, s2], axis=0)    # (2, HID1)


def _fc2_stats_kernel(q_ref, w1_ref, ac1_ref, w2_ref, h2_ref, stats_ref, *,
                      batch, tile_b):
    h1 = _fc1_fma(q_ref[...], w1_ref[...])
    h1 = jnp.maximum(ac1_ref[0:1, :] * h1 + ac1_ref[1:2, :], 0.0)
    h2 = jnp.dot(h1.astype(jnp.bfloat16), w2_ref[...],
                 preferred_element_type=jnp.float32)   # (tile_b, HID2) f32
    h2_ref[...] = h2
    # Mask padded rows (bn1 shift makes them nonzero) out of the BN2 statistics.
    row = (pl.program_id(0) * tile_b
           + jax.lax.broadcasted_iota(jnp.int32, (tile_b, HID2), 0))
    h2m = jnp.where(row < batch, h2, 0.0)
    s = jnp.sum(h2m, axis=0, keepdims=True)
    s2 = jnp.sum(h2m * h2m, axis=0, keepdims=True)
    stats_ref[0] = jnp.concatenate([s, s2], axis=0)    # (2, HID2)


def _fc3_kernel(h2_ref, ac2_ref, w3_ref, b3_ref, o_ref):
    h2 = jnp.maximum(ac2_ref[0:1, :] * h2_ref[...] + ac2_ref[1:2, :], 0.0)
    h3 = jnp.dot(h2.astype(jnp.bfloat16), w3_ref[...],
                 preferred_element_type=jnp.float32) + b3_ref[...]
    o_ref[...] = jnp.tanh(h3)


def _bn_scale_shift(sum_, sumsq, count, gamma, beta):
    """Fold train-mode BatchNorm (biased var, eps=1e-5) into y = a*x + c."""
    mean = sum_ / count
    var = jnp.maximum(sumsq / count - mean * mean, 0.0)
    a = gamma * jax.lax.rsqrt(var + BN_EPS)
    return jnp.stack([a, beta - a * mean], axis=0)     # (2, F)


def mlp_forward(q_out, params):
    B = q_out.shape[0]
    # Tile choice: fill the MXU M dimension for large B; single tile otherwise.
    tile_b = 512 if B >= 512 else max(8, ((B + 7) // 8) * 8)
    Bp = ((B + tile_b - 1) // tile_b) * tile_b
    T = Bp // tile_b
    q_pad = jnp.pad(q_out, ((0, Bp - B), (0, 0))) if Bp != B else q_out

    w1 = params["w1"]                                  # (4, 128) f32, VPU path
    w2 = params["w2"].astype(jnp.bfloat16)             # bf16 MXU operands,
    w3 = params["w3"].astype(jnp.bfloat16)             # f32 accumulation
    b3 = params["b3"].reshape(1, OUTPUT_DIM)

    par = pltpu.CompilerParams(dimension_semantics=("parallel",))

    def resident(shape):
        n = len(shape)
        return pl.BlockSpec(shape, lambda i, n=n: (0,) * n)

    # --- K1: fc1 + BN1 partial sums -----------------------------------------
    stats1 = pl.pallas_call(
        _fc1_stats_kernel,
        out_shape=jax.ShapeDtypeStruct((T, 2, HID1), jnp.float32),
        grid_spec=pltpu.PrefetchScalarGridSpec(
            num_scalar_prefetch=0, grid=(T,),
            in_specs=[pl.BlockSpec((tile_b, N_QUBITS), lambda i: (i, 0)),
                      resident((N_QUBITS, HID1))],
            out_specs=pl.BlockSpec((1, 2, HID1), lambda i: (i, 0, 0)),
        ),
        compiler_params=par,
    )(q_pad, w1)
    s1 = jnp.sum(stats1, axis=0)
    ac1 = _bn_scale_shift(s1[0], s1[1], B, params["g1"], params["be1"])

    # --- K2: bn1/relu + fc2 + BN2 partial sums -------------------------------
    h2_pre, stats2 = pl.pallas_call(
        functools.partial(_fc2_stats_kernel, batch=B, tile_b=tile_b),
        out_shape=(jax.ShapeDtypeStruct((Bp, HID2), jnp.float32),
                   jax.ShapeDtypeStruct((T, 2, HID2), jnp.float32)),
        grid_spec=pltpu.PrefetchScalarGridSpec(
            num_scalar_prefetch=0, grid=(T,),
            in_specs=[pl.BlockSpec((tile_b, N_QUBITS), lambda i: (i, 0)),
                      resident((N_QUBITS, HID1)),
                      resident((2, HID1)),
                      resident((HID1, HID2))],
            out_specs=(pl.BlockSpec((tile_b, HID2), lambda i: (i, 0)),
                       pl.BlockSpec((1, 2, HID2), lambda i: (i, 0, 0))),
        ),
        compiler_params=par,
    )(q_pad, w1, ac1, w2)
    s2 = jnp.sum(stats2, axis=0)
    ac2 = _bn_scale_shift(s2[0], s2[1], B, params["g2"], params["be2"])

    # --- K3: bn2/relu + fc3 + tanh -------------------------------------------
    out = pl.pallas_call(
        _fc3_kernel,
        out_shape=jax.ShapeDtypeStruct((Bp, OUTPUT_DIM), jnp.float32),
        grid_spec=pltpu.PrefetchScalarGridSpec(
            num_scalar_prefetch=0, grid=(T,),
            in_specs=[pl.BlockSpec((tile_b, HID2), lambda i: (i, 0)),
                      resident((2, HID2)),
                      resident((HID2, OUTPUT_DIM)),
                      resident((1, OUTPUT_DIM))],
            out_specs=pl.BlockSpec((tile_b, OUTPUT_DIM), lambda i: (i, 0)),
        ),
        compiler_params=par,
    )(h2_pre, ac2, w3, b3)

    return out[:B] if Bp != B else out


# ----------------------------------------------------------------------------
# Parameters & full forward
# ----------------------------------------------------------------------------
def init_params(key):
    ks = jax.random.split(key, 5)
    return {
        "qparams": jax.random.normal(ks[0], (DEPTH * 2 * N_QUBITS,), jnp.float32),
        # Linear weights stored (in, out) so kernels compute x @ W.
        "w1": jax.random.normal(ks[1], (N_QUBITS, HID1), jnp.float32) * 0.1,
        "w2": jax.random.normal(ks[2], (HID1, HID2), jnp.float32) * 0.1,
        "w3": jax.random.normal(ks[3], (HID2, OUTPUT_DIM), jnp.float32) * 0.1,
        "b3": jax.random.normal(ks[4], (OUTPUT_DIM,), jnp.float32) * 0.1,
        # fc1/fc2 biases omitted: a Linear bias feeding train-mode BatchNorm is
        # cancelled exactly by the batch-mean subtraction.
        "g1": jnp.ones((HID1,), jnp.float32),
        "be1": jnp.zeros((HID1,), jnp.float32),
        "g2": jnp.ones((HID2,), jnp.float32),
        "be2": jnp.zeros((HID2,), jnp.float32),
    }


@jax.jit
def quantum_generator_forward(x, params):
    """x: (B, N_QUBITS) f32 -> (B, 1, 16, 16) f32 (matches q_out.view(-1,1,16,16))."""
    q_out = quantum_expvals_batched(params["qparams"], x)   # (B, 4)
    out = mlp_forward(q_out, params)                        # (B, 256)
    return out.reshape(-1, 1, 16, 16)


if __name__ == "__main__":
    key = jax.random.PRNGKey(0)
    k_param, k_x = jax.random.split(key)
    params = init_params(k_param)

    B = 8
    x = jax.random.normal(k_x, (B, N_QUBITS), jnp.float32)

    y = quantum_generator_forward(x, params)
    jax.block_until_ready(y)
    assert y.shape == (B, 1, 16, 16)
    assert y.dtype == jnp.float32
    assert bool(jnp.all(jnp.isfinite(y)))
    print("KERNEL_OK")
</pallas_src>

<mosaic_0001>
module attributes {stable_mosaic.version = 11 : i64} {
  func.func @_fc1_stats_kernel(%arg0: i32, %arg1: memref<8x4xf32, #tpu.memory_space<vmem>>, %arg2: memref<4x128xf32, #tpu.memory_space<vmem>>, %arg3: memref<1x2x128xf32, #tpu.memory_space<vmem>>) attributes {dimension_semantics = [#tpu.dimension_semantics<parallel>], iteration_bounds = array<i64: 1>, scalar_prefetch = 0 : i64, scratch_operands = 0 : i64, tpu.core_type = #tpu.core_type<tc>, window_params = [{transform_indices = @transform_0, window_bounds = array<i64: 8, 4>}, {pipeline_mode = #tpu.pipeline_mode<synchronous>, transform_indices = @transform_1, window_bounds = array<i64: 4, 128>}, {transform_indices = @transform_2, window_bounds = array<i64: 1, 2, 128>}]} {
    %c0 = arith.constant 0 : index
    %c0_0 = arith.constant 0 : index
    %0 = vector.load %arg1[%c0, %c0_0] : memref<8x4xf32, #tpu.memory_space<vmem>>, vector<8x4xf32>
    %c0_1 = arith.constant 0 : index
    %c0_2 = arith.constant 0 : index
    %1 = vector.load %arg2[%c0_1, %c0_2] : memref<4x128xf32, #tpu.memory_space<vmem>>, vector<4x128xf32>
    %2 = vector.extract_strided_slice %0 {offsets = [0, 0], sizes = [8, 1], strides = [1, 1]} : vector<8x4xf32> to vector<8x1xf32>
    %3 = vector.extract_strided_slice %1 {offsets = [0, 0], sizes = [1, 128], strides = [1, 1]} : vector<4x128xf32> to vector<1x128xf32>
    %4 = vector.broadcast %2 : vector<8x1xf32> to vector<8x128xf32>
    %5 = vector.broadcast %3 : vector<1x128xf32> to vector<8x128xf32>
    %6 = arith.mulf %4, %5 : vector<8x128xf32>
    %7 = vector.extract_strided_slice %0 {offsets = [0, 1], sizes = [8, 1], strides = [1, 1]} : vector<8x4xf32> to vector<8x1xf32>
    %8 = vector.extract_strided_slice %1 {offsets = [1, 0], sizes = [1, 128], strides = [1, 1]} : vector<4x128xf32> to vector<1x128xf32>
    %9 = vector.broadcast %7 : vector<8x1xf32> to vector<8x128xf32>
    %10 = vector.broadcast %8 : vector<1x128xf32> to vector<8x128xf32>
    %11 = arith.mulf %9, %10 : vector<8x128xf32>
    %12 = arith.addf %6, %11 : vector<8x128xf32>
    %13 = vector.extract_strided_slice %0 {offsets = [0, 2], sizes = [8, 1], strides = [1, 1]} : vector<8x4xf32> to vector<8x1xf32>
    %14 = vector.extract_strided_slice %1 {offsets = [2, 0], sizes = [1, 128], strides = [1, 1]} : vector<4x128xf32> to vector<1x128xf32>
    %15 = vector.broadcast %13 : vector<8x1xf32> to vector<8x128xf32>
    %16 = vector.broadcast %14 : vector<1x128xf32> to vector<8x128xf32>
    %17 = arith.mulf %15, %16 : vector<8x128xf32>
    %18 = arith.addf %12, %17 : vector<8x128xf32>
    %19 = vector.extract_strided_slice %0 {offsets = [0, 3], sizes = [8, 1], strides = [1, 1]} : vector<8x4xf32> to vector<8x1xf32>
    %20 = vector.extract_strided_slice %1 {offsets = [3, 0], sizes = [1, 128], strides = [1, 1]} : vector<4x128xf32> to vector<1x128xf32>
    %21 = vector.broadcast %19 : vector<8x1xf32> to vector<8x128xf32>
    %22 = vector.broadcast %20 : vector<1x128xf32> to vector<8x128xf32>
    %23 = arith.mulf %21, %22 : vector<8x128xf32>
    %24 = arith.addf %18, %23 : vector<8x128xf32>
    %cst = arith.constant dense<0.000000e+00> : vector<128xf32>
    %25 = vector.multi_reduction <add>, %24, %cst [0] : vector<8x128xf32> to vector<128xf32>
    %26 = vector.shape_cast %25 : vector<128xf32> to vector<1x128xf32>
    %27 = arith.mulf %24, %24 : vector<8x128xf32>
    %cst_3 = arith.constant dense<0.000000e+00> : vector<128xf32>
    %28 = vector.multi_reduction <add>, %27, %cst_3 [0] : vector<8x128xf32> to vector<128xf32>
    %29 = vector.shape_cast %28 : vector<128xf32> to vector<1x128xf32>
    %30 = tpu.concatenate %26, %29 in 0 : vector<1x128xf32>, vector<1x128xf32> -> vector<2x128xf32>
    %c0_4 = arith.constant 0 : index
    %c0_5 = arith.constant 0 : index
    %c0_6 = arith.constant 0 : index
    %31 = vector.load %arg3[%c0_4, %c0_5, %c0_6] : memref<1x2x128xf32, #tpu.memory_space<vmem>>, vector<1x2x128xf32>
    %32 = vector.shape_cast %31 : vector<1x2x128xf32> to vector<2x128xf32>
    %33 = vector.shape_cast %30 : vector<2x128xf32> to vector<1x2x128xf32>
    tpu.vector_store %arg3[%c0_4, %c0_5, %c0_6], %33 {strides = array<i32>} : memref<1x2x128xf32, #tpu.memory_space<vmem>>, vector<1x2x128xf32>,
    return
  }
  func.func @transform_0(%arg0: i32) -> (i32, i32) {
    %c0_i32 = arith.constant 0 : i32
    %c0_i32_0 = arith.constant 0 : i32
    return %arg0, %c0_i32 : i32, i32
  }
  func.func @transform_1(%arg0: i32) -> (i32, i32) {
    %c0_i32 = arith.constant 0 : i32
    %c0_i32_0 = arith.constant 0 : i32
    %c0_i32_1 = arith.constant 0 : i32
    return %c0_i32, %c0_i32_0 : i32, i32
  }
  func.func @transform_2(%arg0: i32) -> (i32, i32, i32) {
    %c0_i32 = arith.constant 0 : i32
    %c0_i32_0 = arith.constant 0 : i32
    %c0_i32_1 = arith.constant 0 : i32
    return %arg0, %c0_i32, %c0_i32_0 : i32, i32, i32
  }
}

module attributes {stable_mosaic.version = 11 : i64} {
  func.func @_fc2_stats_kernel(%arg0: i32, %arg1: memref<8x4xf32, #tpu.memory_space<vmem>>, %arg2: memref<4x128xf32, #tpu.memory_space<vmem>>, %arg3: memref<2x128xf32, #tpu.memory_space<vmem>>, %arg4: memref<128x256xbf16, #tpu.memory_space<vmem>>, %arg5: memref<8x256xf32, #tpu.memory_space<vmem>>, %arg6: memref<1x2x256xf32, #tpu.memory_space<vmem>>) attributes {dimension_semantics = [#tpu.dimension_semantics<parallel>], iteration_bounds = array<i64: 1>, scalar_prefetch = 0 : i64, scratch_operands = 0 : i64, tpu.core_type = #tpu.core_type<tc>, window_params = [{transform_indices = @transform_0, window_bounds = array<i64: 8, 4>}, {pipeline_mode = #tpu.pipeline_mode<synchronous>, transform_indices = @transform_1, window_bounds = array<i64: 4, 128>}, {pipeline_mode = #tpu.pipeline_mode<synchronous>, transform_indices = @transform_2, window_bounds = array<i64: 2, 128>}, {pipeline_mode = #tpu.pipeline_mode<synchronous>, transform_indices = @transform_3, window_bounds = array<i64: 128, 256>}, {transform_indices = @transform_4, window_bounds = array<i64: 8, 256>}, {transform_indices = @transform_5, window_bounds = array<i64: 1, 2, 256>}]} {
    %c0 = arith.constant 0 : index
    %c0_0 = arith.constant 0 : index
    %0 = vector.load %arg1[%c0, %c0_0] : memref<8x4xf32, #tpu.memory_space<vmem>>, vector<8x4xf32>
    %c0_1 = arith.constant 0 : index
    %c0_2 = arith.constant 0 : index
    %1 = vector.load %arg2[%c0_1, %c0_2] : memref<4x128xf32, #tpu.memory_space<vmem>>, vector<4x128xf32>
    %2 = vector.extract_strided_slice %0 {offsets = [0, 0], sizes = [8, 1], strides = [1, 1]} : vector<8x4xf32> to vector<8x1xf32>
    %3 = vector.extract_strided_slice %1 {offsets = [0, 0], sizes = [1, 128], strides = [1, 1]} : vector<4x128xf32> to vector<1x128xf32>
    %4 = vector.broadcast %2 : vector<8x1xf32> to vector<8x128xf32>
    %5 = vector.broadcast %3 : vector<1x128xf32> to vector<8x128xf32>
    %6 = arith.mulf %4, %5 : vector<8x128xf32>
    %7 = vector.extract_strided_slice %0 {offsets = [0, 1], sizes = [8, 1], strides = [1, 1]} : vector<8x4xf32> to vector<8x1xf32>
    %8 = vector.extract_strided_slice %1 {offsets = [1, 0], sizes = [1, 128], strides = [1, 1]} : vector<4x128xf32> to vector<1x128xf32>
    %9 = vector.broadcast %7 : vector<8x1xf32> to vector<8x128xf32>
    %10 = vector.broadcast %8 : vector<1x128xf32> to vector<8x128xf32>
    %11 = arith.mulf %9, %10 : vector<8x128xf32>
    %12 = arith.addf %6, %11 : vector<8x128xf32>
    %13 = vector.extract_strided_slice %0 {offsets = [0, 2], sizes = [8, 1], strides = [1, 1]} : vector<8x4xf32> to vector<8x1xf32>
    %14 = vector.extract_strided_slice %1 {offsets = [2, 0], sizes = [1, 128], strides = [1, 1]} : vector<4x128xf32> to vector<1x128xf32>
    %15 = vector.broadcast %13 : vector<8x1xf32> to vector<8x128xf32>
    %16 = vector.broadcast %14 : vector<1x128xf32> to vector<8x128xf32>
    %17 = arith.mulf %15, %16 : vector<8x128xf32>
    %18 = arith.addf %12, %17 : vector<8x128xf32>
    %19 = vector.extract_strided_slice %0 {offsets = [0, 3], sizes = [8, 1], strides = [1, 1]} : vector<8x4xf32> to vector<8x1xf32>
    %20 = vector.extract_strided_slice %1 {offsets = [3, 0], sizes = [1, 128], strides = [1, 1]} : vector<4x128xf32> to vector<1x128xf32>
    %21 = vector.broadcast %19 : vector<8x1xf32> to vector<8x128xf32>
    %22 = vector.broadcast %20 : vector<1x128xf32> to vector<8x128xf32>
    %23 = arith.mulf %21, %22 : vector<8x128xf32>
    %24 = arith.addf %18, %23 : vector<8x128xf32>
    %c0_3 = arith.constant 0 : index
    %c0_4 = arith.constant 0 : index
    %25 = vector.load %arg3[%c0_3, %c0_4] : memref<2x128xf32, #tpu.memory_space<vmem>>, vector<1x128xf32>
    %26 = vector.broadcast %25 : vector<1x128xf32> to vector<8x128xf32>
    %27 = arith.mulf %26, %24 : vector<8x128xf32>
    %c1 = arith.constant 1 : index
    %c0_5 = arith.constant 0 : index
    %28 = vector.load %arg3[%c1, %c0_5] : memref<2x128xf32, #tpu.memory_space<vmem>>, vector<1x128xf32>
    %29 = vector.broadcast %28 : vector<1x128xf32> to vector<8x128xf32>
    %30 = arith.addf %27, %29 : vector<8x128xf32>
    %cst = arith.constant 0.000000e+00 : f32
    %31 = vector.broadcast %cst : f32 to vector<8x128xf32>
    %32 = arith.maximumf %30, %31 : vector<8x128xf32>
    %33 = arith.truncf %32 : vector<8x128xf32> to vector<8x128xbf16>
    %c0_6 = arith.constant 0 : index
    %c0_7 = arith.constant 0 : index
    %34 = vector.load %arg4[%c0_6, %c0_7] : memref<128x256xbf16, #tpu.memory_space<vmem>>, vector<128x256xbf16>
    %cst_8 = arith.constant dense<0.000000e+00> : vector<8x256xf32>
    %35 = tpu.matmul %33, %34, %cst_8 {dimension_numbers = #tpu.dot_dimension_numbers<[1], [0], [0], [1], [0, 0, 1, 1], [], []>} : vector<8x128xbf16>, vector<128x256xbf16>, vector<8x256xf32> -> vector<8x256xf32>
    %c0_9 = arith.constant 0 : index
    %c0_10 = arith.constant 0 : index
    %36 = vector.load %arg5[%c0_9, %c0_10] : memref<8x256xf32, #tpu.memory_space<vmem>>, vector<8x256xf32>
    tpu.vector_store %arg5[%c0_9, %c0_10], %35 {strides = array<i32>} : memref<8x256xf32, #tpu.memory_space<vmem>>, vector<8x256xf32>,
    %c8_i32 = arith.constant 8 : i32
    %37 = arith.muli %arg0, %c8_i32 : i32
    %38 = tpu.iota {dimensions = array<i32: 0>} : vector<8x256xi32>
    %39 = vector.broadcast %37 : i32 to vector<8x256xi32>
    %40 = arith.addi %39, %38 : vector<8x256xi32>
    %c8_i32_11 = arith.constant 8 : i32
    %41 = vector.broadcast %c8_i32_11 : i32 to vector<8x256xi32>
    %42 = arith.cmpi slt, %40, %41 : vector<8x256xi32>
    %cst_12 = arith.constant 0.000000e+00 : f32
    %43 = vector.broadcast %cst_12 : f32 to vector<8x256xf32>
    %44 = arith.select %42, %35, %43 : vector<8x256xi1>, vector<8x256xf32>
    %cst_13 = arith.constant dense<0.000000e+00> : vector<256xf32>
    %45 = vector.multi_reduction <add>, %44, %cst_13 [0] : vector<8x256xf32> to vector<256xf32>
    %46 = vector.shape_cast %45 : vector<256xf32> to vector<1x256xf32>
    %47 = arith.mulf %44, %44 : vector<8x256xf32>
    %cst_14 = arith.constant dense<0.000000e+00> : vector<256xf32>
    %48 = vector.multi_reduction <add>, %47, %cst_14 [0] : vector<8x256xf32> to vector<256xf32>
    %49 = vector.shape_cast %48 : vector<256xf32> to vector<1x256xf32>
    %50 = tpu.concatenate %46, %49 in 0 : vector<1x256xf32>, vector<1x256xf32> -> vector<2x256xf32>
    %c0_15 = arith.constant 0 : index
    %c0_16 = arith.constant 0 : index
    %c0_17 = arith.constant 0 : index
    %51 = vector.load %arg6[%c0_15, %c0_16, %c0_17] : memref<1x2x256xf32, #tpu.memory_space<vmem>>, vector<1x2x256xf32>
    %52 = vector.shape_cast %51 : vector<1x2x256xf32> to vector<2x256xf32>
    %53 = vector.shape_cast %50 : vector<2x256xf32> to vector<1x2x256xf32>
    tpu.vector_store %arg6[%c0_15, %c0_16, %c0_17], %53 {strides = array<i32>} : memref<1x2x256xf32, #tpu.memory_space<vmem>>, vector<1x2x256xf32>,
    return
  }
  func.func @transform_0(%arg0: i32) -> (i32, i32) {
    %c0_i32 = arith.constant 0 : i32
    %c0_i32_0 = arith.constant 0 : i32
    return %arg0, %c0_i32 : i32, i32
  }
  func.func @transform_1(%arg0: i32) -> (i32, i32) {
    %c0_i32 = arith.constant 0 : i32
    %c0_i32_0 = arith.constant 0 : i32
    %c0_i32_1 = arith.constant 0 : i32
    return %c0_i32, %c0_i32_0 : i32, i32
  }
  func.func @transform_2(%arg0: i32) -> (i32, i32) {
    %c0_i32 = arith.constant 0 : i32
    %c0_i32_0 = arith.constant 0 : i32
    %c0_i32_1 = arith.constant 0 : i32
    return %c0_i32, %c0_i32_0 : i32, i32
  }
  func.func @transform_3(%arg0: i32) -> (i32, i32) {
    %c0_i32 = arith.constant 0 : i32
    %c0_i32_0 = arith.constant 0 : i32
    %c0_i32_1 = arith.constant 0 : i32
    return %c0_i32, %c0_i32_0 : i32, i32
  }
  func.func @transform_4(%arg0: i32) -> (i32, i32) {
    %c0_i32 = arith.constant 0 : i32
    %c0_i32_0 = arith.constant 0 : i32
    return %arg0, %c0_i32 : i32, i32
  }
  func.func @transform_5(%arg0: i32) -> (i32, i32, i32) {
    %c0_i32 = arith.constant 0 : i32
    %c0_i32_0 = arith.constant 0 : i32
    %c0_i32_1 = arith.constant 0 : i32
    return %arg0, %c0_i32, %c0_i32_0 : i32, i32, i32
  }
}

module attributes {stable_mosaic.version = 11 : i64} {
  func.func @_fc3_kernel(%arg0: i32, %arg1: memref<8x256xf32, #tpu.memory_space<vmem>>, %arg2: memref<2x256xf32, #tpu.memory_space<vmem>>, %arg3: memref<256x256xbf16, #tpu.memory_space<vmem>>, %arg4: memref<1x256xf32, #tpu.memory_space<vmem>>, %arg5: memref<8x256xf32, #tpu.memory_space<vmem>>) attributes {dimension_semantics = [#tpu.dimension_semantics<parallel>], iteration_bounds = array<i64: 1>, scalar_prefetch = 0 : i64, scratch_operands = 0 : i64, tpu.core_type = #tpu.core_type<tc>, window_params = [{transform_indices = @transform_0, window_bounds = array<i64: 8, 256>}, {pipeline_mode = #tpu.pipeline_mode<synchronous>, transform_indices = @transform_1, window_bounds = array<i64: 2, 256>}, {pipeline_mode = #tpu.pipeline_mode<synchronous>, transform_indices = @transform_2, window_bounds = array<i64: 256, 256>}, {pipeline_mode = #tpu.pipeline_mode<synchronous>, transform_indices = @transform_3, window_bounds = array<i64: 1, 256>}, {transform_indices = @transform_4, window_bounds = array<i64: 8, 256>}]} {
    %c0 = arith.constant 0 : index
    %c0_0 = arith.constant 0 : index
    %0 = vector.load %arg2[%c0, %c0_0] : memref<2x256xf32, #tpu.memory_space<vmem>>, vector<1x256xf32>
    %c0_1 = arith.constant 0 : index
    %c0_2 = arith.constant 0 : index
    %1 = vector.load %arg1[%c0_1, %c0_2] : memref<8x256xf32, #tpu.memory_space<vmem>>, vector<8x256xf32>
    %2 = vector.broadcast %0 : vector<1x256xf32> to vector<8x256xf32>
    %3 = arith.mulf %2, %1 : vector<8x256xf32>
    %c1 = arith.constant 1 : index
    %c0_3 = arith.constant 0 : index
    %4 = vector.load %arg2[%c1, %c0_3] : memref<2x256xf32, #tpu.memory_space<vmem>>, vector<1x256xf32>
    %5 = vector.broadcast %4 : vector<1x256xf32> to vector<8x256xf32>
    %6 = arith.addf %3, %5 : vector<8x256xf32>
    %cst = arith.constant 0.000000e+00 : f32
    %7 = vector.broadcast %cst : f32 to vector<8x256xf32>
    %8 = arith.maximumf %6, %7 : vector<8x256xf32>
    %9 = arith.truncf %8 : vector<8x256xf32> to vector<8x256xbf16>
    %c0_4 = arith.constant 0 : index
    %c0_5 = arith.constant 0 : index
    %10 = vector.load %arg3[%c0_4, %c0_5] : memref<256x256xbf16, #tpu.memory_space<vmem>>, vector<256x256xbf16>
    %cst_6 = arith.constant dense<0.000000e+00> : vector<8x256xf32>
    %11 = tpu.matmul %9, %10, %cst_6 {dimension_numbers = #tpu.dot_dimension_numbers<[1], [0], [0], [1], [0, 0, 1, 1], [], []>} : vector<8x256xbf16>, vector<256x256xbf16>, vector<8x256xf32> -> vector<8x256xf32>
    %c0_7 = arith.constant 0 : index
    %c0_8 = arith.constant 0 : index
    %12 = vector.load %arg4[%c0_7, %c0_8] : memref<1x256xf32, #tpu.memory_space<vmem>>, vector<1x256xf32>
    %13 = vector.broadcast %12 : vector<1x256xf32> to vector<8x256xf32>
    %14 = arith.addf %11, %13 : vector<8x256xf32>
    %15 = math.tanh %14 : vector<8x256xf32>
    %c0_9 = arith.constant 0 : index
    %c0_10 = arith.constant 0 : index
    %16 = vector.load %arg5[%c0_9, %c0_10] : memref<8x256xf32, #tpu.memory_space<vmem>>, vector<8x256xf32>
    tpu.vector_store %arg5[%c0_9, %c0_10], %15 {strides = array<i32>} : memref<8x256xf32, #tpu.memory_space<vmem>>, vector<8x256xf32>,
    return
  }
  func.func @transform_0(%arg0: i32) -> (i32, i32) {
    %c0_i32 = arith.constant 0 : i32
    %c0_i32_0 = arith.constant 0 : i32
    return %arg0, %c0_i32 : i32, i32
  }
  func.func @transform_1(%arg0: i32) -> (i32, i32) {
    %c0_i32 = arith.constant 0 : i32
    %c0_i32_0 = arith.constant 0 : i32
    %c0_i32_1 = arith.constant 0 : i32
    return %c0_i32, %c0_i32_0 : i32, i32
  }
  func.func @transform_2(%arg0: i32) -> (i32, i32) {
    %c0_i32 = arith.constant 0 : i32
    %c0_i32_0 = arith.constant 0 : i32
    %c0_i32_1 = arith.constant 0 : i32
    return %c0_i32, %c0_i32_0 : i32, i32
  }
  func.func @transform_3(%arg0: i32) -> (i32, i32) {
    %c0_i32 = arith.constant 0 : i32
    %c0_i32_0 = arith.constant 0 : i32
    %c0_i32_1 = arith.constant 0 : i32
    return %c0_i32, %c0_i32_0 : i32, i32
  }
  func.func @transform_4(%arg0: i32) -> (i32, i32) {
    %c0_i32 = arith.constant 0 : i32
    %c0_i32_0 = arith.constant 0 : i32
    return %arg0, %c0_i32 : i32, i32
  }
}

</mosaic_0001>

<llo_original>
// kernel: quantum_generator_forward.3
$region0: #{quantum_generator_forward.3}
  #allocation0 [shape = 'u32[]', space=smem, size = 0x4, offset = 0x4, fixed_abs, tag = 'smem constant byte address 0x4 - core index']
  #allocation1 [shape = 'u32[144,128]{1,0:T(1,128)}', space=vmem, size = 0x12000, scoped, tag = 'internal scratch']
  %s0 = inlined_call_operand.vmem [shape: f32[8,4], index: 0, kind: input, shape index: {}]
  %s1 = inlined_call_operand.vmem [shape: f32[4,128], index: 1, kind: input, shape index: {}]
  %s2 = inlined_call_operand.vmem [shape: f32[1,2,128], index: 2, kind: output, shape index: {}]
  %s3 = sld [smem:[#allocation0]]
  $region18: #{quantum_generator_forward.3} parent=0
    _
  %s5 = ssub.s32 1, %s3
  %s6 = scalar_select 0, %s5, %s3
  // Predicated region
  $region2: #{quantum_generator_forward.3} parent=0 // pred_check
    _
  $region3: #{quantum_generator_forward.3} parent=0 // pred_check_branch
    %8 = sbr.rel (0) target = $region5
  $region4: #{quantum_generator_forward.3} parent=0 // pred_region
    _
  $region5: #{quantum_generator_forward.3} parent=0 // pred_fallthru
    _
  // Predicated region
  $region6: #{quantum_generator_forward.3} parent=0 // pred_check
    _
  $region7: #{quantum_generator_forward.3} parent=0 // pred_check_branch
    %10 = sbr.rel (0) target = $region9
  $region8: #{quantum_generator_forward.3} parent=0 // pred_region
    _
  $region9: #{quantum_generator_forward.3} parent=0 // pred_fallthru
    _
  %v11 = vld [vmem:[%s0] sm:$0xff]
  %v12 = vld [vmem:[%s1] sm:$0xf]
  %14 = vset.pattern.permute.xlu0 0
  %15 = vperm.xlu0 %14, %v11
  %v16 = vpop.permute.xlu0 %15
  %v18 = vlaneseq
  %v19 = vshrl.u32 %v18, 7
  %v20 = vsub.s32 0, %v19
  %v21 = vrot.slane %v12, %v20
  %v22 = vmul.f32 %v16, %v21
  %23 = vset.pattern.permute.xlu0 1
  %24 = vperm.xlu0 %23, %v11
  %v25 = vpop.permute.xlu0 %24
  %v27 = vlaneseq
  %v28 = vshrl.u32 %v27, 7
  %v29 = vsub.s32 1, %v28
  %v30 = vrot.slane %v12, %v29
  %v31 = vmul.f32 %v25, %v30
  %v32 = vadd.f32 %v22, %v31
  %33 = vset.pattern.permute.xlu0 2
  %34 = vperm.xlu0 %33, %v11
  %v35 = vpop.permute.xlu0 %34
  %v37 = vlaneseq
  %v38 = vshrl.u32 %v37, 7
  %v39 = vsub.s32 2, %v38
  %v40 = vrot.slane %v12, %v39
  %v41 = vmul.f32 %v35, %v40
  %v42 = vadd.f32 %v32, %v41
  %43 = vset.pattern.permute.xlu0 3
  %44 = vperm.xlu0 %43, %v11
  %v45 = vpop.permute.xlu0 %44
  %v47 = vlaneseq
  %v48 = vshrl.u32 %v47, 7
  %v49 = vsub.s32 3, %v48
  %v50 = vrot.slane %v12, %v49
  %v51 = vmul.f32 %v45, %v50
  %v52 = vadd.f32 %v42, %v51
  %v53 = vrot.slane %v52, 4
  %v54 = vadd.f32 %v52, %v53
  %v55 = vrot.slane %v54, 2
  %v56 = vadd.f32 %v54, %v55
  %v57 = vrot.slane %v56, 1
  %v58 = vadd.f32 %v56, %v57
  %v59 = vmul.f32 %v52, %v52
  %v60 = vrot.slane %v59, 4
  %v61 = vadd.f32 %v59, %v60
  %v62 = vrot.slane %v61, 2
  %v63 = vadd.f32 %v61, %v62
  %v64 = vrot.slane %v63, 1
  %v65 = vadd.f32 %v63, %v64
  %vm66 = vcmask 1040384
  %v67 = vsel %vm66, %v58, %v65
  %68 = vst [vmem:[%s2] sm:$0x3] %v67
  // Predicated region
  $region10: #{quantum_generator_forward.3} parent=0 // pred_check
    _
  $region11: #{quantum_generator_forward.3} parent=0 // pred_check_branch
    %70 = sbr.rel (0) target = $region13
  $region12: #{quantum_generator_forward.3} parent=0 // pred_region
    _
  $region13: #{quantum_generator_forward.3} parent=0 // pred_fallthru
    _
  // Predicated region
  $region14: #{quantum_generator_forward.3} parent=0 // pred_check
    _
  $region15: #{quantum_generator_forward.3} parent=0 // pred_check_branch
    %72 = sbr.rel (0) target = $region17
  $region16: #{quantum_generator_forward.3} parent=0 // pred_region
    _
  $region17: #{quantum_generator_forward.3} parent=0 // pred_fallthru
    _

// kernel: quantum_generator_forward.4
$region0: #{quantum_generator_forward.4}
  #allocation0 [shape = 'u32[]', space=smem, size = 0x4, offset = 0x4, fixed_abs, tag = 'smem constant byte address 0x4 - core index']
  #allocation1 [shape = 'u32[144,128]{1,0:T(1,128)}', space=vmem, size = 0x12000, scoped, tag = 'internal scratch']
  %s0 = inlined_call_operand.vmem [shape: f32[8,4], index: 0, kind: input, shape index: {}]
  %s1 = inlined_call_operand.vmem [shape: f32[4,128], index: 1, kind: input, shape index: {}]
  %s2 = inlined_call_operand.vmem [shape: f32[2,128], index: 2, kind: input, shape index: {}]
  %s3 = inlined_call_operand.vmem [shape: bf16[128,256], index: 3, kind: input, shape index: {}]
  %s4 = inlined_call_operand.vmem [shape: f32[8,256], index: 4, kind: output, shape index: {0}]
  %s5 = inlined_call_operand.vmem [shape: f32[1,2,256], index: 5, kind: output, shape index: {1}]
  %6 = xla_tuple %s4, %s5
  %s7 = sld [smem:[#allocation0]]
  $region34: #{quantum_generator_forward.4} parent=0
    _
  %s9 = ssub.s32 1, %s7
  %s10 = scalar_select 0, %s9, %s7
  // Predicated region
  $region2: #{quantum_generator_forward.4} parent=0 // pred_check
    _
  $region3: #{quantum_generator_forward.4} parent=0 // pred_check_branch
    %12 = sbr.rel (0) target = $region5
  $region4: #{quantum_generator_forward.4} parent=0 // pred_region
    _
  $region5: #{quantum_generator_forward.4} parent=0 // pred_fallthru
    _
  // Predicated region
  $region6: #{quantum_generator_forward.4} parent=0 // pred_check
    _
  $region7: #{quantum_generator_forward.4} parent=0 // pred_check_branch
    %14 = sbr.rel (0) target = $region9
  $region8: #{quantum_generator_forward.4} parent=0 // pred_region
    _
  $region9: #{quantum_generator_forward.4} parent=0 // pred_fallthru
    _
  // Predicated region
  $region10: #{quantum_generator_forward.4} parent=0 // pred_check
    _
  $region11: #{quantum_generator_forward.4} parent=0 // pred_check_branch
    %16 = sbr.rel (0) target = $region13
  $region12: #{quantum_generator_forward.4} parent=0 // pred_region
    _
  $region13: #{quantum_generator_forward.4} parent=0 // pred_fallthru
    _
  // Predicated region
  $region14: #{quantum_generator_forward.4} parent=0 // pred_check
    _
  $region15: #{quantum_generator_forward.4} parent=0 // pred_check_branch
    %18 = sbr.rel (0) target = $region17
  $region16: #{quantum_generator_forward.4} parent=0 // pred_region
    _
  $region17: #{quantum_generator_forward.4} parent=0 // pred_fallthru
    _
  %v20 = vld [vmem:[%s0] sm:$0xff]
  %v21 = vld [vmem:[%s1] sm:$0xf]
  %23 = vset.pattern.permute.xlu0 0
  %24 = vperm.xlu0 %23, %v20
  %v25 = vpop.permute.xlu0 %24
  %v27 = vlaneseq
  %v28 = vshrl.u32 %v27, 7
  %v29 = vsub.s32 0, %v28
  %v30 = vrot.slane %v21, %v29
  %v31 = vmul.f32 %v25, %v30
  %32 = vset.pattern.permute.xlu0 1
  %33 = vperm.xlu0 %32, %v20
  %v34 = vpop.permute.xlu0 %33
  %v36 = vlaneseq
  %v37 = vshrl.u32 %v36, 7
  %v38 = vsub.s32 1, %v37
  %v39 = vrot.slane %v21, %v38
  %v40 = vmul.f32 %v34, %v39
  %v41 = vadd.f32 %v31, %v40
  %42 = vset.pattern.permute.xlu0 2
  %43 = vperm.xlu0 %42, %v20
  %v44 = vpop.permute.xlu0 %43
  %v46 = vlaneseq
  %v47 = vshrl.u32 %v46, 7
  %v48 = vsub.s32 2, %v47
  %v49 = vrot.slane %v21, %v48
  %v50 = vmul.f32 %v44, %v49
  %v51 = vadd.f32 %v41, %v50
  %52 = vset.pattern.permute.xlu0 3
  %53 = vperm.xlu0 %52, %v20
  %v54 = vpop.permute.xlu0 %53
  %v56 = vlaneseq
  %v57 = vshrl.u32 %v56, 7
  %v58 = vsub.s32 3, %v57
  %v59 = vrot.slane %v21, %v58
  %v60 = vmul.f32 %v54, %v59
  %v61 = vadd.f32 %v51, %v60
  %v62 = vld [vmem:[%s2] sm:$0x1]
  %v63 = vlaneseq
  %v64 = vshrl.u32 %v63, 7
  %v65 = vsub.s32 0, %v64
  %v66 = vrot.slane %v62, %v65
  %v67 = vmul.f32 %v66, %v61
  %v68 = vld [vmem:[%s2 + $0x1] sm:$0x1]
  %v69 = vlaneseq
  %v70 = vshrl.u32 %v69, 7
  %v71 = vsub.s32 0, %v70
  %v72 = vrot.slane %v68, %v71
  %v73 = vadd.f32 %v67, %v72
  %v74 = vmax.f32 %v73, 0.0
  %v75 = vpack.c.bf16 %v74, %v74
  %v76 = vld [vmem:[%s3] sm:$0xff]
  %v77 = vld [vmem:[%s3 + $0x8] sm:$0xff]
  %v78 = vld [vmem:[%s3 + $0x10] sm:$0xff]
  %v79 = vld [vmem:[%s3 + $0x18] sm:$0xff]
  %v80 = vld [vmem:[%s3 + $0x20] sm:$0xff]
  %v81 = vld [vmem:[%s3 + $0x28] sm:$0xff]
  %v82 = vld [vmem:[%s3 + $0x30] sm:$0xff]
  %v83 = vld [vmem:[%s3 + $0x38] sm:$0xff]
  %v84 = vld [vmem:[%s3 + $0x40] sm:$0xff]
  %v85 = vld [vmem:[%s3 + $0x48] sm:$0xff]
  %v86 = vld [vmem:[%s3 + $0x50] sm:$0xff]
  %v87 = vld [vmem:[%s3 + $0x58] sm:$0xff]
  %v88 = vld [vmem:[%s3 + $0x60] sm:$0xff]
  %v89 = vld [vmem:[%s3 + $0x68] sm:$0xff]
  %v90 = vld [vmem:[%s3 + $0x70] sm:$0xff]
  %v91 = vld [vmem:[%s3 + $0x78] sm:$0xff]
  %v108 = vunpack.c.l.b16 %v76
  %v109 = vunpack.c.h.b16 %v76
  %v110 = vunpack.c.l.b16 %v77
  %v111 = vunpack.c.h.b16 %v77
  %v112 = vunpack.c.l.b16 %v78
  %v113 = vunpack.c.h.b16 %v78
  %v114 = vunpack.c.l.b16 %v79
  %v115 = vunpack.c.h.b16 %v79
  %v116 = vunpack.c.l.b16 %v80
  %v117 = vunpack.c.h.b16 %v80
  %v118 = vunpack.c.l.b16 %v81
  %v119 = vunpack.c.h.b16 %v81
  %v120 = vunpack.c.l.b16 %v82
  %v121 = vunpack.c.h.b16 %v82
  %v122 = vunpack.c.l.b16 %v83
  %v123 = vunpack.c.h.b16 %v83
  %v124 = vunpack.c.l.b16 %v84
  %v125 = vunpack.c.h.b16 %v84
  %v126 = vunpack.c.l.b16 %v85
  %v127 = vunpack.c.h.b16 %v85
  %v128 = vunpack.c.l.b16 %v86
  %v129 = vunpack.c.h.b16 %v86
  %v130 = vunpack.c.l.b16 %v87
  %v131 = vunpack.c.h.b16 %v87
  %v132 = vunpack.c.l.b16 %v88
  %v133 = vunpack.c.h.b16 %v88
  %v134 = vunpack.c.l.b16 %v89
  %v135 = vunpack.c.h.b16 %v89
  %v136 = vunpack.c.l.b16 %v90
  %v137 = vunpack.c.h.b16 %v90
  %v138 = vunpack.c.l.b16 %v91
  %v139 = vunpack.c.h.b16 %v91
  %v140 = vpack.c.b16 %v110, %v108
  %v141 = vpack.c.b16 %v111, %v109
  %v142 = vpack.c.b16 %v114, %v112
  %v143 = vpack.c.b16 %v115, %v113
  %v144 = vpack.c.b16 %v118, %v116
  %v145 = vpack.c.b16 %v119, %v117
  %v146 = vpack.c.b16 %v122, %v120
  %v147 = vpack.c.b16 %v123, %v121
  %v148 = vpack.c.b16 %v126, %v124
  %v149 = vpack.c.b16 %v127, %v125
  %v150 = vpack.c.b16 %v130, %v128
  %v151 = vpack.c.b16 %v131, %v129
  %v152 = vpack.c.b16 %v134, %v132
  %v153 = vpack.c.b16 %v135, %v133
  %v154 = vpack.c.b16 %v138, %v136
  %v155 = vpack.c.b16 %v139, %v137
  %172 = vmatprep.subr.bf16.mxu0 %v141
  %173 = vmatpush1.bf16.msra.mxu0 %v140
  %174 = vmatprep.subr.bf16.mxu0 %v143
  %175 = vmatpush1.bf16.msra.mxu0 %v142
  %176 = vmatprep.subr.bf16.mxu0 %v145
  %177 = vmatpush1.bf16.msra.mxu0 %v144
  %178 = vmatprep.subr.bf16.mxu0 %v147
  %179 = vmatpush1.bf16.msra.mxu0 %v146
  %180 = vmatprep.subr.bf16.mxu0 %v149
  %181 = vmatpush1.bf16.msra.mxu0 %v148
  %182 = vmatprep.subr.bf16.mxu0 %v151
  %183 = vmatpush1.bf16.msra.mxu0 %v150
  %184 = vmatprep.subr.bf16.mxu0 %v153
  %185 = vmatpush1.bf16.msra.mxu0 %v152
  %186 = vmatprep.subr.bf16.mxu0 %v155
  %187 = vmatpush1.bf16.msra.mxu0 %v154
  %188 = vmatprep.subr.bf16.mxu0 0
  %189 = vmatpush1.bf16.msra.mxu0 0
  %190 = vmatprep.subr.bf16.mxu0 0
  %191 = vmatpush1.bf16.msra.mxu0 0
  %192 = vmatprep.subr.bf16.mxu0 0
  %193 = vmatpush1.bf16.msra.mxu0 0
  %194 = vmatprep.subr.bf16.mxu0 0
  %195 = vmatpush1.bf16.msra.mxu0 0
  %196 = vmatprep.subr.bf16.mxu0 0
  %197 = vmatpush1.bf16.msra.mxu0 0
  %198 = vmatprep.subr.bf16.mxu0 0
  %199 = vmatpush1.bf16.msra.mxu0 0
  %200 = vmatprep.subr.bf16.mxu0 0
  %201 = vmatpush1.bf16.msra.mxu0 0
  %202 = vmatprep.subr.bf16.mxu0 0
  %203 = vmatpush1.bf16.msra.mxu0 0
  %204 = vmatprep.mubr.bf16.mxu0 0
  %205 = vmatmul.mubr.bf16.gmra.mrb[0].mxu0 %v75
  %v206 = vpop.f32.mrb[0].mxu0
  %v207 = vadd.f32 0.0, %v206
  %v208 = vpop.f32.mrb[0].mxu0
  %v209 = vadd.f32 0.0, %v208
  %v210 = vpop.f32.mrb[0].mxu0
  %v211 = vpop.f32.mrb[0].mxu0
  %212 = vdwg.mxu0
  %213 = vst [vmem:[%s4] sm:$0xff] %v207
  %214 = vst [vmem:[%s4 + $0x8] sm:$0xff] %v209
  %s215 = smul.u32 0, 8
  %v216 = vlaneseq
  %v217 = vshrl.u32 %v216, 7
  %v218 = vstv %s215
  %v219 = vadd.s32 %v218, %v217
  %vm220 = vcmp.lt.s32.totalorder %v219, 8
  %v221 = vsel %vm220, %v207, 0.0
  %v222 = vsel %vm220, %v209, 0.0
  %v223 = vrot.slane %v221, 4
  %v224 = vadd.f32 %v221, %v223
  %v225 = vrot.slane %v224, 2
  %v226 = vadd.f32 %v224, %v225
  %v227 = vrot.slane %v226, 1
  %v228 = vadd.f32 %v226, %v227
  %v229 = vrot.slane %v222, 4
  %v230 = vadd.f32 %v222, %v229
  %v231 = vrot.slane %v230, 2
  %v232 = vadd.f32 %v230, %v231
  %v233 = vrot.slane %v232, 1
  %v234 = vadd.f32 %v232, %v233
  %v235 = vmul.f32 %v221, %v221
  %v236 = vmul.f32 %v222, %v222
  %v237 = vrot.slane %v235, 4
  %v238 = vadd.f32 %v235, %v237
  %v239 = vrot.slane %v238, 2
  %v240 = vadd.f32 %v238, %v239
  %v241 = vrot.slane %v240, 1
  %v242 = vadd.f32 %v240, %v241
  %v243 = vrot.slane %v236, 4
  %v244 = vadd.f32 %v236, %v243
  %v245 = vrot.slane %v244, 2
  %v246 = vadd.f32 %v244, %v245
  %v247 = vrot.slane %v246, 1
  %v248 = vadd.f32 %v246, %v247
  %vm249 = vcmask 1040384
  %v250 = vsel %vm249, %v228, %v242
  %v251 = vsel %vm249, %v234, %v248
  %v254 = vcombine.low %v250, %v251
  %v256 = vunpack.c.l.s4 1983009808
  %v257 = vunpack.c.0.s8 %v256
  %v258 = vlaneseq
  %v259 = vshrl.u32 %v258, 7
  %v260 = vsub.s32 %v257, %v259
  %v261 = vrot.slane %v254, %v260
  %263 = vst [vmem:[%s5] sm:$0xf] %v261
  // Predicated region
  $region18: #{quantum_generator_forward.4} parent=0 // pred_check
    _
  $region19: #{quantum_generator_forward.4} parent=0 // pred_check_branch
    %265 = sbr.rel (0) target = $region21
  $region20: #{quantum_generator_forward.4} parent=0 // pred_region
    _
  $region21: #{quantum_generator_forward.4} parent=0 // pred_fallthru
    _
  // Predicated region
  $region22: #{quantum_generator_forward.4} parent=0 // pred_check
    _
  $region23: #{quantum_generator_forward.4} parent=0 // pred_check_branch
    %267 = sbr.rel (0) target = $region25
  $region24: #{quantum_generator_forward.4} parent=0 // pred_region
    _
  $region25: #{quantum_generator_forward.4} parent=0 // pred_fallthru
    _
  // Predicated region
  $region26: #{quantum_generator_forward.4} parent=0 // pred_check
    _
  $region27: #{quantum_generator_forward.4} parent=0 // pred_check_branch
    %269 = sbr.rel (0) target = $region29
  $region28: #{quantum_generator_forward.4} parent=0 // pred_region
    _
  $region29: #{quantum_generator_forward.4} parent=0 // pred_fallthru
    _
  // Predicated region
  $region30: #{quantum_generator_forward.4} parent=0 // pred_check
    _
  $region31: #{quantum_generator_forward.4} parent=0 // pred_check_branch
    %271 = sbr.rel (0) target = $region33
  $region32: #{quantum_generator_forward.4} parent=0 // pred_region
    _
  $region33: #{quantum_generator_forward.4} parent=0 // pred_fallthru
    _

// kernel: quantum_generator_forward.5
$region0: #{quantum_generator_forward.5}
  #allocation0 [shape = 'u32[]', space=smem, size = 0x4, offset = 0x4, fixed_abs, tag = 'smem constant byte address 0x4 - core index']
  #allocation1 [shape = 'u32[144,128]{1,0:T(1,128)}', space=vmem, size = 0x12000, scoped, tag = 'internal scratch']
  %s0 = inlined_call_operand.vmem [shape: f32[8,256], index: 0, kind: input, shape index: {}]
  %s1 = inlined_call_operand.vmem [shape: f32[2,256], index: 1, kind: input, shape index: {}]
  %s2 = inlined_call_operand.vmem [shape: bf16[256,256], index: 2, kind: input, shape index: {}]
  %s3 = inlined_call_operand.vmem [shape: f32[1,256], index: 3, kind: input, shape index: {}]
  %s4 = inlined_call_operand.vmem [shape: f32[8,256], index: 4, kind: output, shape index: {}]
  %s5 = sld [smem:[#allocation0]]
  $region26: #{quantum_generator_forward.5} parent=0
    _
  %s7 = ssub.s32 1, %s5
  %s8 = scalar_select 0, %s7, %s5
  // Predicated region
  $region2: #{quantum_generator_forward.5} parent=0 // pred_check
    _
  $region3: #{quantum_generator_forward.5} parent=0 // pred_check_branch
    %10 = sbr.rel (0) target = $region5
  $region4: #{quantum_generator_forward.5} parent=0 // pred_region
    _
  $region5: #{quantum_generator_forward.5} parent=0 // pred_fallthru
    _
  // Predicated region
  $region6: #{quantum_generator_forward.5} parent=0 // pred_check
    _
  $region7: #{quantum_generator_forward.5} parent=0 // pred_check_branch
    %12 = sbr.rel (0) target = $region9
  $region8: #{quantum_generator_forward.5} parent=0 // pred_region
    _
  $region9: #{quantum_generator_forward.5} parent=0 // pred_fallthru
    _
  // Predicated region
  $region10: #{quantum_generator_forward.5} parent=0 // pred_check
    _
  $region11: #{quantum_generator_forward.5} parent=0 // pred_check_branch
    %14 = sbr.rel (0) target = $region13
  $region12: #{quantum_generator_forward.5} parent=0 // pred_region
    _
  $region13: #{quantum_generator_forward.5} parent=0 // pred_fallthru
    _
  // Predicated region
  $region14: #{quantum_generator_forward.5} parent=0 // pred_check
    _
  $region15: #{quantum_generator_forward.5} parent=0 // pred_check_branch
    %16 = sbr.rel (0) target = $region17
  $region16: #{quantum_generator_forward.5} parent=0 // pred_region
    _
  $region17: #{quantum_generator_forward.5} parent=0 // pred_fallthru
    _
  %v17 = vld [vmem:[%s1] ss:$2 sm:$0x3]
  %v18 = vld [vmem:[%s0] sm:$0xff]
  %v19 = vld [vmem:[%s0 + $0x8] sm:$0xff]
  %v21 = vlaneseq
  %v22 = vshrl.u32 %v21, 7
  %v23 = vsub.s32 0, %v22
  %v24 = vrot.slane %v17, %v23
  %v25 = vlaneseq
  %v26 = vshrl.u32 %v25, 7
  %v27 = vsub.s32 1, %v26
  %v28 = vrot.slane %v17, %v27
  %v31 = vmul.f32 %v24, %v18
  %v32 = vmul.f32 %v28, %v19
  %s33 = scalar_lea.vmem %s1, 1
  %v34 = vld [vmem:[%s33] ss:$2 sm:$0x3]
  %v36 = vlaneseq
  %v37 = vshrl.u32 %v36, 7
  %v38 = vsub.s32 0, %v37
  %v39 = vrot.slane %v34, %v38
  %v40 = vlaneseq
  %v41 = vshrl.u32 %v40, 7
  %v42 = vsub.s32 1, %v41
  %v43 = vrot.slane %v34, %v42
  %v46 = vadd.f32 %v31, %v39
  %v47 = vadd.f32 %v32, %v43
  %v48 = vmax.f32 %v46, 0.0
  %v49 = vmax.f32 %v47, 0.0
  %v50 = vpack.c.bf16 %v48, %v48
  %v51 = vpack.c.bf16 %v49, %v49
  %v52 = vld [vmem:[%s2] sm:$0xff]
  %v53 = vld [vmem:[%s2 + $0x8] sm:$0xff]
  %v54 = vld [vmem:[%s2 + $0x10] sm:$0xff]
  %v55 = vld [vmem:[%s2 + $0x18] sm:$0xff]
  %v56 = vld [vmem:[%s2 + $0x20] sm:$0xff]
  %v57 = vld [vmem:[%s2 + $0x28] sm:$0xff]
  %v58 = vld [vmem:[%s2 + $0x30] sm:$0xff]
  %v59 = vld [vmem:[%s2 + $0x38] sm:$0xff]
  %v60 = vld [vmem:[%s2 + $0x40] sm:$0xff]
  %v61 = vld [vmem:[%s2 + $0x48] sm:$0xff]
  %v62 = vld [vmem:[%s2 + $0x50] sm:$0xff]
  %v63 = vld [vmem:[%s2 + $0x58] sm:$0xff]
  %v64 = vld [vmem:[%s2 + $0x60] sm:$0xff]
  %v65 = vld [vmem:[%s2 + $0x68] sm:$0xff]
  %v66 = vld [vmem:[%s2 + $0x70] sm:$0xff]
  %v67 = vld [vmem:[%s2 + $0x78] sm:$0xff]
  %v68 = vld [vmem:[%s2 + $0x80] sm:$0xff]
  %v69 = vld [vmem:[%s2 + $0x88] sm:$0xff]
  %v70 = vld [vmem:[%s2 + $0x90] sm:$0xff]
  %v71 = vld [vmem:[%s2 + $0x98] sm:$0xff]
  %v72 = vld [vmem:[%s2 + $0xa0] sm:$0xff]
  %v73 = vld [vmem:[%s2 + $0xa8] sm:$0xff]
  %v74 = vld [vmem:[%s2 + $0xb0] sm:$0xff]
  %v75 = vld [vmem:[%s2 + $0xb8] sm:$0xff]
  %v76 = vld [vmem:[%s2 + $0xc0] sm:$0xff]
  %v77 = vld [vmem:[%s2 + $0xc8] sm:$0xff]
  %v78 = vld [vmem:[%s2 + $0xd0] sm:$0xff]
  %v79 = vld [vmem:[%s2 + $0xd8] sm:$0xff]
  %v80 = vld [vmem:[%s2 + $0xe0] sm:$0xff]
  %v81 = vld [vmem:[%s2 + $0xe8] sm:$0xff]
  %v82 = vld [vmem:[%s2 + $0xf0] sm:$0xff]
  %v83 = vld [vmem:[%s2 + $0xf8] sm:$0xff]
  %v84 = vld [vmem:[%s3] sm:$0x3]
  %v86 = vlaneseq
  %v87 = vshrl.u32 %v86, 7
  %v88 = vsub.s32 0, %v87
  %v89 = vrot.slane %v84, %v88
  %v90 = vlaneseq
  %v91 = vshrl.u32 %v90, 7
  %v92 = vsub.s32 1, %v91
  %v93 = vrot.slane %v84, %v92
  %v128 = vunpack.c.l.b16 %v52
  %v129 = vunpack.c.h.b16 %v52
  %v130 = vunpack.c.l.b16 %v53
  %v131 = vunpack.c.h.b16 %v53
  %v132 = vunpack.c.l.b16 %v54
  %v133 = vunpack.c.h.b16 %v54
  %v134 = vunpack.c.l.b16 %v55
  %v135 = vunpack.c.h.b16 %v55
  %v136 = vunpack.c.l.b16 %v56
  %v137 = vunpack.c.h.b16 %v56
  %v138 = vunpack.c.l.b16 %v57
  %v139 = vunpack.c.h.b16 %v57
  %v140 = vunpack.c.l.b16 %v58
  %v141 = vunpack.c.h.b16 %v58
  %v142 = vunpack.c.l.b16 %v59
  %v143 = vunpack.c.h.b16 %v59
  %v144 = vunpack.c.l.b16 %v60
  %v145 = vunpack.c.h.b16 %v60
  %v146 = vunpack.c.l.b16 %v61
  %v147 = vunpack.c.h.b16 %v61
  %v148 = vunpack.c.l.b16 %v62
  %v149 = vunpack.c.h.b16 %v62
  %v150 = vunpack.c.l.b16 %v63
  %v151 = vunpack.c.h.b16 %v63
  %v152 = vunpack.c.l.b16 %v64
  %v153 = vunpack.c.h.b16 %v64
  %v154 = vunpack.c.l.b16 %v65
  %v155 = vunpack.c.h.b16 %v65
  %v156 = vunpack.c.l.b16 %v66
  %v157 = vunpack.c.h.b16 %v66
  %v158 = vunpack.c.l.b16 %v67
  %v159 = vunpack.c.h.b16 %v67
  %v160 = vunpack.c.l.b16 %v68
  %v161 = vunpack.c.h.b16 %v68
  %v162 = vunpack.c.l.b16 %v69
  %v163 = vunpack.c.h.b16 %v69
  %v164 = vunpack.c.l.b16 %v70
  %v165 = vunpack.c.h.b16 %v70
  %v166 = vunpack.c.l.b16 %v71
  %v167 = vunpack.c.h.b16 %v71
  %v168 = vunpack.c.l.b16 %v72
  %v169 = vunpack.c.h.b16 %v72
  %v170 = vunpack.c.l.b16 %v73
  %v171 = vunpack.c.h.b16 %v73
  %v172 = vunpack.c.l.b16 %v74
  %v173 = vunpack.c.h.b16 %v74
  %v174 = vunpack.c.l.b16 %v75
  %v175 = vunpack.c.h.b16 %v75
  %v176 = vunpack.c.l.b16 %v76
  %v177 = vunpack.c.h.b16 %v76
  %v178 = vunpack.c.l.b16 %v77
  %v179 = vunpack.c.h.b16 %v77
  %v180 = vunpack.c.l.b16 %v78
  %v181 = vunpack.c.h.b16 %v78
  %v182 = vunpack.c.l.b16 %v79
  %v183 = vunpack.c.h.b16 %v79
  %v184 = vunpack.c.l.b16 %v80
  %v185 = vunpack.c.h.b16 %v80
  %v186 = vunpack.c.l.b16 %v81
  %v187 = vunpack.c.h.b16 %v81
  %v188 = vunpack.c.l.b16 %v82
  %v189 = vunpack.c.h.b16 %v82
  %v190 = vunpack.c.l.b16 %v83
  %v191 = vunpack.c.h.b16 %v83
  %v192 = vpack.c.b16 %v130, %v128
  %v193 = vpack.c.b16 %v131, %v129
  %v194 = vpack.c.b16 %v134, %v132
  %v195 = vpack.c.b16 %v135, %v133
  %v196 = vpack.c.b16 %v138, %v136
  %v197 = vpack.c.b16 %v139, %v137
  %v198 = vpack.c.b16 %v142, %v140
  %v199 = vpack.c.b16 %v143, %v141
  %v200 = vpack.c.b16 %v146, %v144
  %v201 = vpack.c.b16 %v147, %v145
  %v202 = vpack.c.b16 %v150, %v148
  %v203 = vpack.c.b16 %v151, %v149
  %v204 = vpack.c.b16 %v154, %v152
  %v205 = vpack.c.b16 %v155, %v153
  %v206 = vpack.c.b16 %v158, %v156
  %v207 = vpack.c.b16 %v159, %v157
  %v208 = vpack.c.b16 %v162, %v160
  %v209 = vpack.c.b16 %v163, %v161
  %v210 = vpack.c.b16 %v166, %v164
  %v211 = vpack.c.b16 %v167, %v165
  %v212 = vpack.c.b16 %v170, %v168
  %v213 = vpack.c.b16 %v171, %v169
  %v214 = vpack.c.b16 %v174, %v172
  %v215 = vpack.c.b16 %v175, %v173
  %v216 = vpack.c.b16 %v178, %v176
  %v217 = vpack.c.b16 %v179, %v177
  %v218 = vpack.c.b16 %v182, %v180
  %v219 = vpack.c.b16 %v183, %v181
  %v220 = vpack.c.b16 %v186, %v184
  %v221 = vpack.c.b16 %v187, %v185
  %v222 = vpack.c.b16 %v190, %v188
  %v223 = vpack.c.b16 %v191, %v189
  %256 = vmatprep.subr.bf16.mxu0 %v193
  %257 = vmatpush1.bf16.msra.mxu0 %v192
  %258 = vmatprep.subr.bf16.mxu0 %v195
  %259 = vmatpush1.bf16.msra.mxu0 %v194
  %260 = vmatprep.subr.bf16.mxu0 %v197
  %261 = vmatpush1.bf16.msra.mxu0 %v196
  %262 = vmatprep.subr.bf16.mxu0 %v199
  %263 = vmatpush1.bf16.msra.mxu0 %v198
  %264 = vmatprep.subr.bf16.mxu0 %v201
  %265 = vmatpush1.bf16.msra.mxu0 %v200
  %266 = vmatprep.subr.bf16.mxu0 %v203
  %267 = vmatpush1.bf16.msra.mxu0 %v202
  %268 = vmatprep.subr.bf16.mxu0 %v205
  %269 = vmatpush1.bf16.msra.mxu0 %v204
  %270 = vmatprep.subr.bf16.mxu0 %v207
  %271 = vmatpush1.bf16.msra.mxu0 %v206
  %272 = vmatprep.subr.bf16.mxu0 %v209
  %273 = vmatpush1.bf16.msra.mxu0 %v208
  %274 = vmatprep.subr.bf16.mxu0 %v211
  %275 = vmatpush1.bf16.msra.mxu0 %v210
  %276 = vmatprep.subr.bf16.mxu0 %v213
  %277 = vmatpush1.bf16.msra.mxu0 %v212
  %278 = vmatprep.subr.bf16.mxu0 %v215
  %279 = vmatpush1.bf16.msra.mxu0 %v214
  %280 = vmatprep.subr.bf16.mxu0 %v217
  %281 = vmatpush1.bf16.msra.mxu0 %v216
  %282 = vmatprep.subr.bf16.mxu0 %v219
  %283 = vmatpush1.bf16.msra.mxu0 %v218
  %284 = vmatprep.subr.bf16.mxu0 %v221
  %285 = vmatpush1.bf16.msra.mxu0 %v220
  %286 = vmatprep.subr.bf16.mxu0 %v223
  %287 = vmatpush1.bf16.msra.mxu0 %v222
  %288 = vmatprep.mubr.bf16.mxu0 %v51
  %289 = vmatmul.mubr.bf16.gmra.mrb[0].mxu0 %v50
  %v290 = vpop.f32.mrb[0].mxu0
  %v291 = vadd.f32 %v89, %v290
  %v292 = vpop.f32.mrb[0].mxu0
  %v293 = vadd.f32 %v93, %v292
  %v294 = vpop.f32.mrb[0].mxu0
  %v295 = vpop.f32.mrb[0].mxu0
  %296 = vdwg.mxu0
  %v297 = vtanh.pop %v291
  %v298 = vtanh.pop %v293
  %299 = vst [vmem:[%s4] sm:$0xff] %v297
  %300 = vst [vmem:[%s4 + $0x8] sm:$0xff] %v298
  // Predicated region
  $region18: #{quantum_generator_forward.5} parent=0 // pred_check
    _
  $region19: #{quantum_generator_forward.5} parent=0 // pred_check_branch
    %302 = sbr.rel (0) target = $region21
  $region20: #{quantum_generator_forward.5} parent=0 // pred_region
    _
  $region21: #{quantum_generator_forward.5} parent=0 // pred_fallthru
    _
  // Predicated region
  $region22: #{quantum_generator_forward.5} parent=0 // pred_check
    _
  $region23: #{quantum_generator_forward.5} parent=0 // pred_check_branch
    %304 = sbr.rel (0) target = $region25
  $region24: #{quantum_generator_forward.5} parent=0 // pred_region
    _
  $region25: #{quantum_generator_forward.5} parent=0 // pred_fallthru
    _

</llo_original>
